<compile_context>
chip_gen: v6e
topology: v6e:2x2x1
jax: 0.10.0
libtpu: 0.0.40
codegen_flags: <defaults>
</compile_context>

<pallas_src>
import functools

import jax
import jax.numpy as jnp
from jax.experimental import pallas as pl
from jax.experimental.pallas import tpu as pltpu


def _round_up(v, m):
    return ((v + m - 1) // m) * m


# --------------------------------------------------------------------------- #
# Kernel
# --------------------------------------------------------------------------- #
def _gap_kernel(x_ref, wcat_ref, bcat_ref, w2_ref,
                pooled_ref, attnw_ref, ent_ref, *, inv_temp):
    Bb, T, D = x_ref.shape
    Hp = w2_ref.shape[1]                         # padded attn hidden width (%128)

    x = x_ref[...]                               # (Bb, T, D), caller dtype (f32)
    # Leading-dim collapse is a free relayout when T % 8 == 0 (f32 sublane
    # tile); otherwise Mosaic inserts a copy (perf only, never correctness).
    x2d = x.reshape(Bb * T, D)

    # ---- fused attn(D->H) + gate(D->D) projection: ONE lane-dense MXU matmul,
    #      bf16 inputs, f32 accumulate. Output width Kp = Hp + Dp is %128. -----
    xw = jnp.dot(x2d.astype(jnp.bfloat16), wcat_ref[...],
                 preferred_element_type=jnp.float32)          # (Bb*T, Kp)
    xw = xw + bcat_ref[...]                                    # f32 bias add

    # ---- attention branch: tanh -> dot with w2 -> (Bb, T) scores (T on lanes)
    # Slice [0:Hp) is lane-tile aligned; padded columns have bias 0 so
    # tanh(0)=0, and w2 is zero-padded there -> they contribute nothing.
    h = jnp.tanh(xw[:, :Hp]).reshape(Bb, T, Hp)
    s = jnp.sum(h * w2_ref[...][None], axis=-1)                # (Bb, T)

    # mean-center over T (also exactly cancels attn_b2), temperature softmax
    s = s - jnp.mean(s, axis=-1, keepdims=True)
    z = s * inv_temp                                           # const 1/temp
    z = z - jnp.max(z, axis=-1, keepdims=True)                 # numerics
    e = jnp.exp(z)
    denom = jnp.sum(e, axis=-1, keepdims=True)                 # (Bb, 1)
    inv = pl.reciprocal(denom, approx=True)                    # EUP, not VPU div
    w = e * inv                                                # (Bb, T)

    # entropy from softmax partials: -sum w log w = log Z - sum(w * z)
    ent = jnp.log(denom) - jnp.sum(w * z, axis=-1, keepdims=True)   # (Bb, 1)

    # ---- gate branch + weighted pooling (fused VPU multiply, sublane reduce) -
    # Slice starts at the 128-aligned column Hp; width D.
    # NOTE: on v6e/v7x this sigmoid/tanh could run in bf16 (bf16 EUP); kept f32
    # so the same code is optimal on v5e and matches reference precision.
    gate = jax.nn.sigmoid(xw[:, Hp:Hp + D]).reshape(Bb, T, D)
    contrib = x.astype(jnp.float32) * gate * w[:, :, None]     # (Bb, T, D)
    pooled = jnp.sum(contrib, axis=1)                          # (Bb, D)

    pooled_ref[...] = pooled.astype(pooled_ref.dtype)
    attnw_ref[...] = w.astype(attnw_ref.dtype)                 # lane-dense (Bb, T)
    ent_ref[...] = ent.astype(ent_ref.dtype)


# --------------------------------------------------------------------------- #
# Block sizing (VMEM-aware, v7x-safe)
# --------------------------------------------------------------------------- #
def _pick_batch_block(B, T, D, x_itemsize, kp, hp):
    """Batch block sized from a VMEM budget; >=2 grid steps when B is large."""
    try:
        vmem_cap = int(pltpu.get_tpu_info().vmem_capacity_bytes)
    except Exception:
        vmem_cap = 64 * 1024 * 1024            # conservative fallback (v7x)
    budget = (2 * vmem_cap) // 3               # leave headroom for Mosaic scratch
    # resident weights (count them double-buffered to be safe):
    resident = D * kp * 2 + kp * 4 + hp * 4    # bf16 w_cat + f32 b_cat + f32 w2
    budget = max(budget - 2 * resident, 1 << 20)
    # live bytes per batch row in one grid step:
    #   double-buffered x input block        : 2 * T * D * itemsize
    #   f32 intermediates xw/h/gate/contrib  : ~ T * (Kp + Hp + 2*D) * 4
    per_row = 2 * T * D * x_itemsize + 4 * T * (kp + hp + 2 * D)
    bb = max(1, budget // max(per_row, 1))
    if B >= 16:
        bb = min(bb, B // 2)                   # >=2 grid steps -> both v7x TCs busy
        bb = max(8, (bb // 8) * 8)             # 8-aligned output sublane blocks
    else:
        bb = B                                 # tiny batch: single block / step
    return int(bb), int(vmem_cap)


# --------------------------------------------------------------------------- #
# Wrapper
# --------------------------------------------------------------------------- #
def gated_attention_pooling(x, params, *, temperature=0.1,
                            return_weights=False, return_entropy=False):
    """x: (B, T, D).  params: dict of PyTorch-layout weights."""
    B, T, D = x.shape
    H = D // 2

    # ---- host-side weight prep (one-time layout plumbing) --------------------
    # Layout of the fused weight (D, Kp):
    #   columns [0, H)        : attn first layer (pad to Hp = roundup(H,128))
    #   columns [Hp, Hp + D)  : gate layer       (pad to Dp = roundup(D,128))
    Hp = max(128, _round_up(H, 128))
    Dp = _round_up(D, 128)
    Kp = Hp + Dp

    w_cat = jnp.zeros((D, Kp), jnp.float32)
    w_cat = w_cat.at[:, :H].set(params['attn_w1'].T)
    w_cat = w_cat.at[:, Hp:Hp + D].set(params['gate_w'].T)
    w_cat = w_cat.astype(jnp.bfloat16)                       # bf16 MXU weights
    b_cat = jnp.zeros((1, Kp), jnp.float32)
    b_cat = b_cat.at[0, :H].set(params['attn_b1'])
    b_cat = b_cat.at[0, Hp:Hp + D].set(params['gate_b'])
    w2p = jnp.zeros((1, Hp), jnp.float32)
    w2p = w2p.at[0, :H].set(params['attn_w2'].reshape(-1))
    # NOTE: attn second-layer bias (attn_b2) is exactly cancelled by the
    # mean-centering over T, so it never enters the kernel.

    Bb, vmem_cap = _pick_batch_block(B, T, D, x.dtype.itemsize, Kp, Hp)
    B_pad = int(pl.cdiv(B, Bb)) * Bb
    x_in = x if B_pad == B else jnp.concatenate(
        [x, jnp.zeros((B_pad - B, T, D), x.dtype)], axis=0)
    grid = (B_pad // Bb,)

    cost = pl.CostEstimate(
        flops=2 * B_pad * T * D * Kp + 6 * B_pad * T * D,
        transcendentals=B_pad * T * (Hp + D + 1),
        bytes_accessed=(B_pad * T * D * x.dtype.itemsize
                        + D * Kp * 2 + (Kp + Hp) * 4
                        + B_pad * (D + T + 1) * 4))

    kernel = functools.partial(_gap_kernel, inv_temp=float(1.0 / temperature))

    pooled_p, attnw_p, ent_p = pl.pallas_call(
        kernel,
        grid=grid,
        in_specs=[
            pl.BlockSpec((Bb, T, D), lambda b: (b, 0, 0)),   # x: streamed/pipelined
            pl.BlockSpec((D, Kp), lambda b: (0, 0)),         # fused weights (resident)
            pl.BlockSpec((1, Kp), lambda b: (0, 0)),         # fused biases (resident)
            pl.BlockSpec((1, Hp), lambda b: (0, 0)),         # attn 2nd-layer weight
        ],
        out_specs=(
            pl.BlockSpec((Bb, D), lambda b: (b, 0)),         # pooled
            pl.BlockSpec((Bb, T), lambda b: (b, 0)),         # attn weights, lane-dense
            pl.BlockSpec((Bb, 1), lambda b: (b, 0)),         # per-batch entropy
        ),
        out_shape=(
            jax.ShapeDtypeStruct((B_pad, D), jnp.float32),
            jax.ShapeDtypeStruct((B_pad, T), jnp.float32),
            jax.ShapeDtypeStruct((B_pad, 1), jnp.float32),
        ),
        compiler_params=pltpu.CompilerParams(
            dimension_semantics=("parallel",),
            vmem_limit_bytes=int((2 * vmem_cap) // 3)),
        cost_estimate=cost,
    )(x_in, w_cat, b_cat, w2p)

    pooled = pooled_p[:B]
    attn_weights = attnw_p[:B].reshape(B, T, 1)   # match module's (B, T, 1) API
    entropy = jnp.mean(ent_p[:B, 0])

    if return_weights and return_entropy:
        return pooled, attn_weights, entropy
    elif return_weights:
        return pooled, attn_weights
    elif return_entropy:
        return pooled, entropy
    return pooled


# --------------------------------------------------------------------------- #
# Parameters + references
# --------------------------------------------------------------------------- #
def _init_params(key, input_dim):
    """Deterministic parameter init matching the module's shapes (PyTorch layout)."""
    H = input_dim // 2
    k1, k2, k3, k4, k5, k6 = jax.random.split(key, 6)
    scale = 0.1
    return {
        'attn_w1': scale * jax.random.normal(k1, (H, input_dim), jnp.float32),
        'attn_b1': scale * jax.random.normal(k2, (H,), jnp.float32),
        'attn_w2': scale * jax.random.normal(k3, (1, H), jnp.float32),
        'attn_b2': scale * jax.random.normal(k4, (1,), jnp.float32),
        'gate_w': scale * jax.random.normal(k5, (input_dim, input_dim), jnp.float32),
        'gate_b': scale * jax.random.normal(k6, (input_dim,), jnp.float32),
    }


def _reference_f32(x, params, temperature):
    """Pure-JAX f32 reference (faithful translation of the PyTorch module)."""
    h = jnp.tanh(x @ params['attn_w1'].T + params['attn_b1'])
    s = h @ params['attn_w2'].T + params['attn_b2']            # (B, T, 1)
    s = s - jnp.mean(s, axis=1, keepdims=True)
    w = jax.nn.softmax(s / temperature, axis=1)
    g = jax.nn.sigmoid(x @ params['gate_w'].T + params['gate_b'])
    pooled = jnp.sum(w * (x * g), axis=1)
    ent = jnp.mean(-jnp.sum(w * jnp.log(w + 1e-8), axis=1))
    return pooled, w, ent


def _reference_bf16(x, params, temperature):
    """Same math, but with bf16 matmul inputs (f32 accumulate), matching the
    kernel's MXU precision so the comparison isolates kernel structure."""
    xb = x.astype(jnp.bfloat16)
    w1 = params['attn_w1'].astype(jnp.bfloat16)
    gw = params['gate_w'].astype(jnp.bfloat16)
    pre1 = jnp.einsum('btd,hd->bth', xb, w1,
                      preferred_element_type=jnp.float32) + params['attn_b1']
    h = jnp.tanh(pre1)
    s = h @ params['attn_w2'].T + params['attn_b2']
    s = s - jnp.mean(s, axis=1, keepdims=True)
    w = jax.nn.softmax(s / temperature, axis=1)
    gpre = jnp.einsum('btd,ed->bte', xb, gw,
                      preferred_element_type=jnp.float32) + params['gate_b']
    g = jax.nn.sigmoid(gpre)
    pooled = jnp.sum(w * (x * g), axis=1)
    ent = jnp.mean(-jnp.sum(w * jnp.log(w + 1e-8), axis=1))
    return pooled, w, ent


# --------------------------------------------------------------------------- #
# Demo / self-check
# --------------------------------------------------------------------------- #
if __name__ == "__main__":
    B, T, D = 2, 8, 32
    temperature = 0.1

    key = jax.random.PRNGKey(0)
    kx, kp = jax.random.split(key)
    x = jax.random.normal(kx, (B, T, D), jnp.float32)
    params = _init_params(kp, D)

    pooled, attn_w, entropy = gated_attention_pooling(
        x, params, temperature=temperature,
        return_weights=True, return_entropy=True)
    jax.block_until_ready((pooled, attn_w, entropy))

    assert pooled.shape == (B, D)
    assert attn_w.shape == (B, T, 1)

    # Structural check: reference that also uses bf16 matmul inputs, so the only
    # deltas are MXU-vs-XLA accumulation order, the EUP approx reciprocal in the
    # softmax, and the analytic entropy form.
    rp, rw, re = _reference_bf16(x, params, temperature)
    assert jnp.allclose(pooled, rp, atol=1e-2, rtol=1e-2)
    assert jnp.allclose(attn_w, rw.reshape(B, T, 1), atol=1e-2, rtol=1e-2)
    assert jnp.allclose(entropy, re, atol=2e-2, rtol=2e-2)

    # Semantic check vs the faithful f32 PyTorch translation; the loose tolerance
    # only reflects the bf16 MXU inputs amplified by the temperature=0.1 softmax.
    fp, fw, fe = _reference_f32(x, params, temperature)
    assert jnp.allclose(pooled, fp, atol=1e-1, rtol=1e-1)
    assert jnp.allclose(attn_w, fw, atol=1e-1, rtol=1e-1)
    assert jnp.allclose(entropy, fe, atol=1e-1, rtol=1e-1)

    print("KERNEL_OK")
</pallas_src>

<mosaic_0001>
module attributes {stable_mosaic.version = 11 : i64} {
  func.func @_gap_kernel(%arg0: i32, %arg1: memref<2x8x32xf32, #tpu.memory_space<vmem>>, %arg2: memref<32x256xbf16, #tpu.memory_space<vmem>>, %arg3: memref<1x256xf32, #tpu.memory_space<vmem>>, %arg4: memref<1x128xf32, #tpu.memory_space<vmem>>, %arg5: memref<2x32xf32, #tpu.memory_space<vmem>>, %arg6: memref<2x8xf32, #tpu.memory_space<vmem>>, %arg7: memref<2x1xf32, #tpu.memory_space<vmem>>) attributes {dimension_semantics = [#tpu.dimension_semantics<parallel>], iteration_bounds = array<i64: 1>, scalar_prefetch = 0 : i64, scratch_operands = 0 : i64, tpu.core_type = #tpu.core_type<tc>, window_params = [{transform_indices = @transform_0, window_bounds = array<i64: 2, 8, 32>}, {pipeline_mode = #tpu.pipeline_mode<synchronous>, transform_indices = @transform_1, window_bounds = array<i64: 32, 256>}, {pipeline_mode = #tpu.pipeline_mode<synchronous>, transform_indices = @transform_2, window_bounds = array<i64: 1, 256>}, {pipeline_mode = #tpu.pipeline_mode<synchronous>, transform_indices = @transform_3, window_bounds = array<i64: 1, 128>}, {transform_indices = @transform_4, window_bounds = array<i64: 2, 32>}, {transform_indices = @transform_5, window_bounds = array<i64: 2, 8>}, {transform_indices = @transform_6, window_bounds = array<i64: 2, 1>}]} {
    %c0 = arith.constant 0 : index
    %c0_0 = arith.constant 0 : index
    %c0_1 = arith.constant 0 : index
    %0 = vector.load %arg1[%c0, %c0_0, %c0_1] : memref<2x8x32xf32, #tpu.memory_space<vmem>>, vector<2x8x32xf32>
    %1 = vector.shape_cast %0 : vector<2x8x32xf32> to vector<16x32xf32>
    %2 = arith.truncf %1 : vector<16x32xf32> to vector<16x32xbf16>
    %c0_2 = arith.constant 0 : index
    %c0_3 = arith.constant 0 : index
    %3 = vector.load %arg2[%c0_2, %c0_3] : memref<32x256xbf16, #tpu.memory_space<vmem>>, vector<32x256xbf16>
    %cst = arith.constant dense<0.000000e+00> : vector<16x256xf32>
    %4 = tpu.matmul %2, %3, %cst {dimension_numbers = #tpu.dot_dimension_numbers<[1], [0], [0], [1], [0, 0, 1, 1], [], []>} : vector<16x32xbf16>, vector<32x256xbf16>, vector<16x256xf32> -> vector<16x256xf32>
    %c0_4 = arith.constant 0 : index
    %c0_5 = arith.constant 0 : index
    %5 = vector.load %arg3[%c0_4, %c0_5] : memref<1x256xf32, #tpu.memory_space<vmem>>, vector<1x256xf32>
    %6 = vector.broadcast %5 : vector<1x256xf32> to vector<16x256xf32>
    %7 = arith.addf %4, %6 : vector<16x256xf32>
    %8 = vector.extract_strided_slice %7 {offsets = [0, 0], sizes = [16, 128], strides = [1, 1]} : vector<16x256xf32> to vector<16x128xf32>
    %9 = math.tanh %8 : vector<16x128xf32>
    %10 = vector.shape_cast %9 : vector<16x128xf32> to vector<2x8x128xf32>
    %c0_6 = arith.constant 0 : index
    %c0_7 = arith.constant 0 : index
    %11 = vector.load %arg4[%c0_6, %c0_7] : memref<1x128xf32, #tpu.memory_space<vmem>>, vector<1x128xf32>
    %12 = vector.shape_cast %11 : vector<1x128xf32> to vector<1x1x128xf32>
    %13 = vector.broadcast %12 : vector<1x1x128xf32> to vector<2x8x128xf32>
    %14 = arith.mulf %10, %13 : vector<2x8x128xf32>
    %cst_8 = arith.constant dense<0.000000e+00> : vector<2x8xf32>
    %15 = vector.multi_reduction <add>, %14, %cst_8 [2] : vector<2x8x128xf32> to vector<2x8xf32>
    %cst_9 = arith.constant dense<0.000000e+00> : vector<2xf32>
    %16 = vector.multi_reduction <add>, %15, %cst_9 [1] : vector<2x8xf32> to vector<2xf32>
    %17 = vector.shape_cast %16 : vector<2xf32> to vector<2x1xf32>
    %cst_10 = arith.constant 8.000000e+00 : f32
    %18 = vector.broadcast %cst_10 : f32 to vector<2x1xf32>
    %19 = arith.divf %17, %18 : vector<2x1xf32>
    %20 = vector.broadcast %19 : vector<2x1xf32> to vector<2x8xf32>
    %21 = arith.subf %15, %20 : vector<2x8xf32>
    %cst_11 = arith.constant 1.000000e+01 : f32
    %22 = vector.broadcast %cst_11 : f32 to vector<2x8xf32>
    %23 = arith.mulf %21, %22 : vector<2x8xf32>
    %cst_12 = arith.constant dense<0xFF800000> : vector<2xf32>
    %24 = vector.multi_reduction <maximumf>, %23, %cst_12 [1] : vector<2x8xf32> to vector<2xf32>
    %25 = vector.shape_cast %24 : vector<2xf32> to vector<2x1xf32>
    %26 = vector.broadcast %25 : vector<2x1xf32> to vector<2x8xf32>
    %27 = arith.subf %23, %26 : vector<2x8xf32>
    %28 = math.exp %27 : vector<2x8xf32>
    %cst_13 = arith.constant dense<0.000000e+00> : vector<2xf32>
    %29 = vector.multi_reduction <add>, %28, %cst_13 [1] : vector<2x8xf32> to vector<2xf32>
    %30 = vector.shape_cast %29 : vector<2xf32> to vector<2x1xf32>
    %31 = tpu.reciprocal %30 {approx = true} : vector<2x1xf32> -> vector<2x1xf32>
    %32 = vector.broadcast %31 : vector<2x1xf32> to vector<2x8xf32>
    %33 = arith.mulf %28, %32 : vector<2x8xf32>
    %34 = math.log %30 : vector<2x1xf32>
    %35 = arith.mulf %33, %27 : vector<2x8xf32>
    %cst_14 = arith.constant dense<0.000000e+00> : vector<2xf32>
    %36 = vector.multi_reduction <add>, %35, %cst_14 [1] : vector<2x8xf32> to vector<2xf32>
    %37 = vector.shape_cast %36 : vector<2xf32> to vector<2x1xf32>
    %38 = arith.subf %34, %37 : vector<2x1xf32>
    %39 = vector.extract_strided_slice %7 {offsets = [0, 128], sizes = [16, 32], strides = [1, 1]} : vector<16x256xf32> to vector<16x32xf32>
    %40 = arith.negf %39 : vector<16x32xf32>
    %41 = math.exp %40 : vector<16x32xf32>
    %cst_15 = arith.constant 1.000000e+00 : f32
    %42 = vector.broadcast %cst_15 : f32 to vector<16x32xf32>
    %43 = arith.addf %42, %41 : vector<16x32xf32>
    %44 = arith.divf %42, %43 : vector<16x32xf32>
    %45 = vector.shape_cast %44 : vector<16x32xf32> to vector<2x8x32xf32>
    %46 = arith.mulf %0, %45 : vector<2x8x32xf32>
    %47 = vector.shape_cast %33 : vector<2x8xf32> to vector<2x8x1xf32>
    %48 = vector.broadcast %47 : vector<2x8x1xf32> to vector<2x8x32xf32>
    %49 = arith.mulf %46, %48 : vector<2x8x32xf32>
    %cst_16 = arith.constant dense<0.000000e+00> : vector<2x32xf32>
    %50 = vector.multi_reduction <add>, %49, %cst_16 [1] : vector<2x8x32xf32> to vector<2x32xf32>
    %c0_17 = arith.constant 0 : index
    %c0_18 = arith.constant 0 : index
    %51 = vector.load %arg5[%c0_17, %c0_18] : memref<2x32xf32, #tpu.memory_space<vmem>>, vector<2x32xf32>
    tpu.vector_store %arg5[%c0_17, %c0_18], %50 {strides = array<i32>} : memref<2x32xf32, #tpu.memory_space<vmem>>, vector<2x32xf32>,
    %c0_19 = arith.constant 0 : index
    %c0_20 = arith.constant 0 : index
    %52 = vector.load %arg6[%c0_19, %c0_20] : memref<2x8xf32, #tpu.memory_space<vmem>>, vector<2x8xf32>
    tpu.vector_store %arg6[%c0_19, %c0_20], %33 {strides = array<i32>} : memref<2x8xf32, #tpu.memory_space<vmem>>, vector<2x8xf32>,
    %c0_21 = arith.constant 0 : index
    %c0_22 = arith.constant 0 : index
    %53 = vector.load %arg7[%c0_21, %c0_22] : memref<2x1xf32, #tpu.memory_space<vmem>>, vector<2x1xf32>
    tpu.vector_store %arg7[%c0_21, %c0_22], %38 {strides = array<i32>} : memref<2x1xf32, #tpu.memory_space<vmem>>, vector<2x1xf32>,
    return
  }
  func.func @transform_0(%arg0: i32) -> (i32, i32, i32) {
    %c0_i32 = arith.constant 0 : i32
    %c0_i32_0 = arith.constant 0 : i32
    %c0_i32_1 = arith.constant 0 : i32
    return %arg0, %c0_i32, %c0_i32_0 : i32, i32, i32
  }
  func.func @transform_1(%arg0: i32) -> (i32, i32) {
    %c0_i32 = arith.constant 0 : i32
    %c0_i32_0 = arith.constant 0 : i32
    %c0_i32_1 = arith.constant 0 : i32
    return %c0_i32, %c0_i32_0 : i32, i32
  }
  func.func @transform_2(%arg0: i32) -> (i32, i32) {
    %c0_i32 = arith.constant 0 : i32
    %c0_i32_0 = arith.constant 0 : i32
    %c0_i32_1 = arith.constant 0 : i32
    return %c0_i32, %c0_i32_0 : i32, i32
  }
  func.func @transform_3(%arg0: i32) -> (i32, i32) {
    %c0_i32 = arith.constant 0 : i32
    %c0_i32_0 = arith.constant 0 : i32
    %c0_i32_1 = arith.constant 0 : i32
    return %c0_i32, %c0_i32_0 : i32, i32
  }
  func.func @transform_4(%arg0: i32) -> (i32, i32) {
    %c0_i32 = arith.constant 0 : i32
    %c0_i32_0 = arith.constant 0 : i32
    return %arg0, %c0_i32 : i32, i32
  }
  func.func @transform_5(%arg0: i32) -> (i32, i32) {
    %c0_i32 = arith.constant 0 : i32
    %c0_i32_0 = arith.constant 0 : i32
    return %arg0, %c0_i32 : i32, i32
  }
  func.func @transform_6(%arg0: i32) -> (i32, i32) {
    %c0_i32 = arith.constant 0 : i32
    %c0_i32_0 = arith.constant 0 : i32
    return %arg0, %c0_i32 : i32, i32
  }
}

</mosaic_0001>

<llo_original>
// kernel: tpu_custom_call.1
$region0: #{tpu_custom_call.1}
  #allocation0 [shape = 'u32[]', space=smem, size = 0x4, offset = 0x4, fixed_abs, tag = 'smem constant byte address 0x4 - core index']
  #allocation1 [shape = 'u32[144,128]{1,0:T(1,128)}', space=vmem, size = 0x12000, scoped, tag = 'internal scratch']
  %s0 = inlined_call_operand.hbm [shape: f32[2,8,32], index: 0, kind: input, shape index: {}]
  %s1 = inlined_call_operand.hbm [shape: bf16[32,256], index: 1, kind: input, shape index: {}]
  %s2 = inlined_call_operand.vmem [shape: f32[1,256], index: 2, kind: input, shape index: {}]
  %s3 = inlined_call_operand.vmem [shape: f32[1,128], index: 3, kind: input, shape index: {}]
  %s4 = inlined_call_operand.hbm [shape: f32[2,32], index: 4, kind: output, shape index: {0}]
  %s5 = inlined_call_operand.hbm [shape: f32[2,8], index: 5, kind: output, shape index: {1}]
  %s6 = inlined_call_operand.vmem [shape: f32[2,1], index: 6, kind: output, shape index: {2}]
  %7 = xla_tuple %s4, %s5, %s6
  %s8 = sld [smem:[#allocation0]]
  $region50: #{tpu_custom_call.1} parent=0
    _
  %s10 = ssub.s32 1, %s8
  %s11 = scalar_select 0, %s10, %s8
  $region1: #{tpu_custom_call.1} parent=0
    #allocation2 [shape = 'u8[8192]{0}', space=vmem, size = 0x2000, scoped, tag = 'input window, operand 0, single buffered']
    #allocation3 [shape = 's32[1]{0}', space=sflag, size = 0x4, scoped, tag = 'scoped memory for tpu_custom_call.1']
    #allocation4 [shape = 's32[1]{0}', space=sflag, size = 0x4, scoped, tag = 'scoped memory for tpu_custom_call.1']
    #allocation5 [shape = 'u8[16384]{0}', space=vmem, size = 0x4000, scoped, tag = 'input window, operand 1, single buffered']
    #allocation6 [shape = 's32[1]{0}', space=sflag, size = 0x4, scoped, tag = 'scoped memory for tpu_custom_call.1']
    #allocation7 [shape = 'u8[1024]{0}', space=vmem, size = 0x400, scoped, tag = 'output window, operand 0, single buffered']
    #allocation8 [shape = 'u8[1024]{0}', space=vmem, size = 0x400, scoped, tag = 'output window, operand 1, single buffered']
    #allocation9 [shape = 's32[1]{0}', space=sflag, size = 0x4, scoped, tag = 'scoped memory for tpu_custom_call.1']
    %12 = vsyncpa [#allocation3], 0
    %13 = vsyncpa [#allocation6], 0
    %14 = vsyncpa [#allocation4], 0
    %15 = vsyncpa [#allocation9], 0
    // Predicated region
    $region2: #{tpu_custom_call.1} parent=1 // pred_check
      _
    $region3: #{tpu_custom_call.1} parent=1 // pred_check_branch
      %17 = sbr.rel (0) target = $region5
    $region4: #{tpu_custom_call.1} parent=1 // pred_region
      %s19 = ssub.s32 256, 256
      %20 = vsyncadd [#allocation3], %s19
      %s21 = sshll.u32 [#allocation2], 4
      %s22 = int_to_ptr.vmem [resolvable:$true] %s21
      %27 = dma.hbm_to_vmem [thread:$0]  %s0, 256, %s22, [#allocation3], 128, 128, 8
    $region5: #{tpu_custom_call.1} parent=1 // pred_fallthru
      _
    // Predicated region
    $region6: #{tpu_custom_call.1} parent=1 // pred_check
      _
    $region7: #{tpu_custom_call.1} parent=1 // pred_check_branch
      %29 = sbr.rel (0) target = $region9
    $region8: #{tpu_custom_call.1} parent=1 // pred_region
      %s31 = ssub.s32 512, 512
      %32 = vsyncadd [#allocation6], %s31
      %s33 = sshll.u32 [#allocation5], 4
      %s34 = int_to_ptr.vmem [resolvable:$true] %s33
      %39 = dma.hbm_to_vmem [thread:$0]  %s1, 512, %s34, [#allocation6], 128, 128, 8
    $region9: #{tpu_custom_call.1} parent=1 // pred_fallthru
      _
    // Predicated region
    $region10: #{tpu_custom_call.1} parent=1 // pred_check
      _
    $region11: #{tpu_custom_call.1} parent=1 // pred_check_branch
      %41 = sbr.rel (0) target = $region13
    $region12: #{tpu_custom_call.1} parent=1 // pred_region
      _
    $region13: #{tpu_custom_call.1} parent=1 // pred_fallthru
      _
    // Predicated region
    $region14: #{tpu_custom_call.1} parent=1 // pred_check
      _
    $region15: #{tpu_custom_call.1} parent=1 // pred_check_branch
      %43 = sbr.rel (0) target = $region17
    $region16: #{tpu_custom_call.1} parent=1 // pred_region
      _
    $region17: #{tpu_custom_call.1} parent=1 // pred_fallthru
      _
    // Predicated region
    $region18: #{tpu_custom_call.1} parent=1 // pred_check
      _
    $region19: #{tpu_custom_call.1} parent=1 // pred_check_branch
      %45 = sbr.rel (0) target = $region21
    $region20: #{tpu_custom_call.1} parent=1 // pred_region
      %46 = dma.done [#allocation3], 256
    $region21: #{tpu_custom_call.1} parent=1 // pred_fallthru
      _
    // Predicated region
    $region22: #{tpu_custom_call.1} parent=1 // pred_check
      _
    $region23: #{tpu_custom_call.1} parent=1 // pred_check_branch
      %48 = sbr.rel (0) target = $region25
    $region24: #{tpu_custom_call.1} parent=1 // pred_region
      %49 = dma.done [#allocation6], 512
    $region25: #{tpu_custom_call.1} parent=1 // pred_fallthru
      _
    %v51 = vld [vmem:[#allocation2] sm:$0xff]
    %v52 = vld [vmem:[#allocation2 + $0x8] sm:$0xff]
    %v53 = vpack.c.bf16 %v52, %v51
    %v54 = vld [vmem:[#allocation5] sm:$0xff]
    %v55 = vld [vmem:[#allocation5 + $0x8] sm:$0xff]
    %v56 = vld [vmem:[#allocation5 + $0x10] sm:$0xff]
    %v57 = vld [vmem:[#allocation5 + $0x18] sm:$0xff]
    %v58 = vld [vmem:[%s2] sm:$0x3]
    %v60 = vlaneseq
    %v61 = vshrl.u32 %v60, 7
    %v62 = vsub.s32 0, %v61
    %v63 = vrot.slane %v58, %v62
    %v64 = vlaneseq
    %v65 = vshrl.u32 %v64, 7
    %v66 = vsub.s32 1, %v65
    %v67 = vrot.slane %v58, %v66
    %v74 = vunpack.c.l.b16 %v54
    %v75 = vunpack.c.h.b16 %v54
    %v76 = vunpack.c.l.b16 %v55
    %v77 = vunpack.c.h.b16 %v55
    %v78 = vunpack.c.l.b16 %v56
    %v79 = vunpack.c.h.b16 %v56
    %v80 = vunpack.c.l.b16 %v57
    %v81 = vunpack.c.h.b16 %v57
    %v82 = vpack.c.b16 %v76, %v74
    %v83 = vpack.c.b16 %v77, %v75
    %v84 = vpack.c.b16 %v80, %v78
    %v85 = vpack.c.b16 %v81, %v79
    %vm90 = vcmask 261120
    %v92 = vsel %vm90, %v53, 0
    %94 = vmatprep.subr.bf16.mxu0 0
    %95 = vmatpush1.bf16.msra.mxu0 0
    %96 = vmatprep.subr.bf16.mxu0 0
    %97 = vmatpush1.bf16.msra.mxu0 0
    %98 = vmatprep.subr.bf16.mxu0 0
    %99 = vmatpush1.bf16.msra.mxu0 0
    %100 = vmatprep.subr.bf16.mxu0 0
    %101 = vmatpush1.bf16.msra.mxu0 0
    %102 = vmatprep.subr.bf16.mxu0 0
    %103 = vmatpush1.bf16.msra.mxu0 0
    %104 = vmatprep.subr.bf16.mxu0 0
    %105 = vmatpush1.bf16.msra.mxu0 0
    %106 = vmatprep.subr.bf16.mxu0 %v85
    %107 = vmatpush1.bf16.msra.mxu0 %v84
    %108 = vmatprep.subr.bf16.mxu0 %v83
    %109 = vmatpush1.bf16.msra.mxu0 %v82
    %110 = vmatprep.subr.bf16.mxu0 0
    %111 = vmatpush2.bf16.msra.mxu0 0
    %112 = vmatprep.subr.bf16.mxu0 0
    %113 = vmatpush2.bf16.msra.mxu0 0
    %114 = vmatprep.subr.bf16.mxu0 0
    %115 = vmatpush2.bf16.msra.mxu0 0
    %116 = vmatprep.subr.bf16.mxu0 0
    %117 = vmatpush2.bf16.msra.mxu0 0
    %118 = vmatprep.subr.bf16.mxu0 0
    %119 = vmatpush2.bf16.msra.mxu0 0
    %120 = vmatprep.subr.bf16.mxu0 0
    %121 = vmatpush2.bf16.msra.mxu0 0
    %122 = vmatprep.subr.bf16.mxu0 0
    %123 = vmatpush2.bf16.msra.mxu0 0
    %124 = vmatprep.subr.bf16.mxu0 0
    %125 = vmatpush2.bf16.msra.mxu0 0
    %126 = vmatprep.mubr.bf16.mxu0 0
    %127 = vmatmul.mubr.bf16.gmra.mxu0 %v92
    %v128 = vpop.f32.mrf.mxu0
    %v129 = vadd.f32 %v63, %v128
    %v130 = vpop.f32.mrf.mxu0
    %v131 = vadd.f32 %v67, %v130
    %v132 = vpop.f32.mrf.mxu0
    %v133 = vadd.f32 %v63, %v132
    %v134 = vpop.f32.mrf.mxu0
    %v135 = vadd.f32 %v67, %v134
    %136 = vdwg.mxu0
    %v137 = vtanh.pop %v129
    %v138 = vtanh.pop %v133
    %v139 = vld [vmem:[%s3] sm:$0x1]
    %v141 = vlaneseq
    %v142 = vshrl.u32 %v141, 7
    %v143 = vsub.s32 0, %v142
    %v144 = vrot.slane %v139, %v143
    %v146 = vmul.f32 %v137, %v144
    %v147 = vmul.f32 %v138, %v144
    %148 = vadd.xlane.f32.xlu0 %v146
    %v149 = vpop.xlane.xlu0 %148
    %150 = vadd.xlane.f32.xlu0 %v147
    %v151 = vpop.xlane.xlu0 %150
    %v154 = vlaneseq
    %v155 = vand.u32 %v154, 127
    %v156 = vlaneseq
    %v157 = vshrl.u32 %v156, 7
    %v158 = vsub.s32 %v155, %v157
    %v159 = vrot.slane %v149, %v158
    %v160 = vlaneseq
    %v161 = vshrl.u32 %v160, 7
    %v162 = vsub.s32 %v155, %v161
    %v163 = vrot.slane %v151, %v162
    %vm164 = vcmask 1041409
    %v165 = vsel %vm164, %v163, %v159
    %vm167 = vcmask 58368
    %v168 = vsel %vm167, %v165, 0.0
    %169 = vadd.xlane.f32.xlu0 %v168
    %v170 = vpop.xlane.xlu0 %169
    %v171 = vrcp.pop 8.0
    %v172 = vmul.f32 %v170, %v171
    %v174 = vlaneseq
    %v175 = vshrl.u32 %v174, 7
    %v176 = vsub.s32 0, %v175
    %v177 = vrot.slane %v172, %v176
    %v178 = vlaneseq
    %v179 = vshrl.u32 %v178, 7
    %v180 = vsub.s32 1, %v179
    %v181 = vrot.slane %v172, %v180
    %v184 = vsub.f32 %v149, %v177
    %v185 = vsub.f32 %v151, %v181
    %v186 = vmul.f32 %v184, 10.0
    %v187 = vmul.f32 %v185, 10.0
    %190 = vset.pattern.permute.xlu0 0
    %191 = vperm.xlu0 %190, %v186
    %v192 = vpop.permute.xlu0 %191
    %193 = vset.pattern.permute.xlu0 0
    %194 = vperm.xlu0 %193, %v187
    %v195 = vpop.permute.xlu0 %194
    %v196 = vlaneseq
    %v197 = vshrl.u32 %v196, 7
    %v198 = vsub.s32 %v155, %v197
    %v199 = vrot.slane %v192, %v198
    %v200 = vlaneseq
    %v201 = vshrl.u32 %v200, 7
    %v202 = vsub.s32 %v155, %v201
    %v203 = vrot.slane %v195, %v202
    %v204 = vsel %vm164, %v203, %v199
    %v206 = vsel %vm167, %v204, -inf
    %207 = vmax.xlane.f32.xlu0 %v206
    %v208 = vpop.xlane.xlu0 %207
    %v210 = vlaneseq
    %v211 = vshrl.u32 %v210, 7
    %v212 = vsub.s32 0, %v211
    %v213 = vrot.slane %v208, %v212
    %v214 = vlaneseq
    %v215 = vshrl.u32 %v214, 7
    %v216 = vsub.s32 1, %v215
    %v217 = vrot.slane %v208, %v216
    %v220 = vsub.f32 %v186, %v213
    %v221 = vsub.f32 %v187, %v217
    %v222 = vmul.f32 %v220, 1.442695
    %v223 = vpow.pop %v222
    %v224 = vmul.f32 %v221, 1.442695
    %v225 = vpow.pop %v224
    %228 = vset.pattern.permute.xlu0 0
    %229 = vperm.xlu0 %228, %v223
    %v230 = vpop.permute.xlu0 %229
    %231 = vset.pattern.permute.xlu0 0
    %232 = vperm.xlu0 %231, %v225
    %v233 = vpop.permute.xlu0 %232
    %v234 = vlaneseq
    %v235 = vshrl.u32 %v234, 7
    %v236 = vsub.s32 %v155, %v235
    %v237 = vrot.slane %v230, %v236
    %v238 = vlaneseq
    %v239 = vshrl.u32 %v238, 7
    %v240 = vsub.s32 %v155, %v239
    %v241 = vrot.slane %v233, %v240
    %v242 = vsel %vm164, %v241, %v237
    %v244 = vsel %vm167, %v242, 0.0
    %245 = vadd.xlane.f32.xlu0 %v244
    %v246 = vpop.xlane.xlu0 %245
    %v247 = vrcp.pop %v246
    %v249 = vlaneseq
    %v250 = vshrl.u32 %v249, 7
    %v251 = vsub.s32 0, %v250
    %v252 = vrot.slane %v247, %v251
    %v253 = vlaneseq
    %v254 = vshrl.u32 %v253, 7
    %v255 = vsub.s32 1, %v254
    %v256 = vrot.slane %v247, %v255
    %v259 = vmul.f32 %v223, %v252
    %v260 = vmul.f32 %v225, %v256
    %v261 = vlog2.pop %v246
    %v262 = vmul.f32 %v261, 0.6931472
    %v263 = vmul.f32 %v259, %v220
    %v264 = vmul.f32 %v260, %v221
    %267 = vset.pattern.permute.xlu0 0
    %268 = vperm.xlu0 %267, %v263
    %v269 = vpop.permute.xlu0 %268
    %270 = vset.pattern.permute.xlu0 0
    %271 = vperm.xlu0 %270, %v264
    %v272 = vpop.permute.xlu0 %271
    %v273 = vlaneseq
    %v274 = vshrl.u32 %v273, 7
    %v275 = vsub.s32 %v155, %v274
    %v276 = vrot.slane %v269, %v275
    %v277 = vlaneseq
    %v278 = vshrl.u32 %v277, 7
    %v279 = vsub.s32 %v155, %v278
    %v280 = vrot.slane %v272, %v279
    %v281 = vsel %vm164, %v280, %v276
    %v283 = vsel %vm167, %v281, 0.0
    %284 = vadd.xlane.f32.xlu0 %v283
    %v285 = vpop.xlane.xlu0 %284
    %v286 = vsub.f32 %v262, %v285
    %v287 = vxor.u32 %v131, 2147483648
    %v288 = vxor.u32 %v135, 2147483648
    %v289 = vmul.f32 %v287, 1.442695
    %v290 = vpow.pop %v289
    %v291 = vmul.f32 %v288, 1.442695
    %v292 = vpow.pop %v291
    %v293 = vadd.f32 %v290, 1.0
    %v294 = vadd.f32 %v292, 1.0
    %v295 = vrcp.pop %v293
    %v296 = vmul.f32 1.0, %v295
    %v297 = vrcp.pop %v294
    %v298 = vmul.f32 1.0, %v297
    %v299 = vmul.f32 %v51, %v296
    %v300 = vmul.f32 %v52, %v298
    %302 = vset.pattern.permute.xlu0 0
    %303 = vperm.xlu0 %302, %v259
    %v304 = vpop.permute.xlu0 %303
    %307 = vset.pattern.permute.xlu0 0
    %308 = vperm.xlu0 %307, %v260
    %v309 = vpop.permute.xlu0 %308
    %v311 = vmul.f32 %v299, %v304
    %v312 = vmul.f32 %v300, %v309
    %v313 = vsel %vm90, %v311, 0.0
    %v314 = vrot.slane %v313, 4
    %v315 = vadd.f32 %v313, %v314
    %v316 = vrot.slane %v315, 2
    %v317 = vadd.f32 %v315, %v316
    %v318 = vrot.slane %v317, 1
    %v319 = vadd.f32 %v317, %v318
    %v320 = vsel %vm90, %v312, 0.0
    %v321 = vrot.slane %v320, 4
    %v322 = vadd.f32 %v320, %v321
    %v323 = vrot.slane %v322, 2
    %v324 = vadd.f32 %v322, %v323
    %v325 = vrot.slane %v324, 1
    %v326 = vadd.f32 %v324, %v325
    %v329 = vsel %vm164, %v326, %v319
    %vm331 = vcmask 254976
    %332 = vst.msk [vmem:[#allocation7] sm:$0x3] %vm331, %v329
    %v333 = vlaneseq
    %v334 = vshrl.u32 %v333, 7
    %v335 = vsub.s32 %v155, %v334
    %v336 = vrot.slane %v304, %v335
    %v337 = vlaneseq
    %v338 = vshrl.u32 %v337, 7
    %v339 = vsub.s32 %v155, %v338
    %v340 = vrot.slane %v309, %v339
    %v341 = vsel %vm164, %v340, %v336
    %343 = vst.msk [vmem:[#allocation8] sm:$0x3] %vm167, %v341
    %vm344 = vcmask 1024
    %345 = vst.msk [vmem:[%s6] sm:$0x3] %vm344, %v286
    // Predicated region
    $region26: #{tpu_custom_call.1} parent=1 // pred_check
      _
    $region27: #{tpu_custom_call.1} parent=1 // pred_check_branch
      %347 = sbr.rel (0) target = $region29
    $region28: #{tpu_custom_call.1} parent=1 // pred_region
      %s349 = ssub.s32 32, 32
      %350 = vsyncadd [#allocation4], %s349
      %s352 = sshll.u32 [#allocation7], 4
      %s353 = int_to_ptr.vmem [resolvable:$true] %s352
      %355 = dma.vmem_to_hbm [thread:$0]  %s353, 32, %s4, [#allocation4]
    $region29: #{tpu_custom_call.1} parent=1 // pred_fallthru
      _
    // Predicated region
    $region30: #{tpu_custom_call.1} parent=1 // pred_check
      _
    $region31: #{tpu_custom_call.1} parent=1 // pred_check_branch
      %357 = sbr.rel (0) target = $region33
    $region32: #{tpu_custom_call.1} parent=1 // pred_region
      %s359 = ssub.s32 32, 32
      %360 = vsyncadd [#allocation9], %s359
      %s362 = sshll.u32 [#allocation8], 4
      %s363 = int_to_ptr.vmem [resolvable:$true] %s362
      %365 = dma.vmem_to_hbm [thread:$0]  %s363, 32, %s5, [#allocation9]
    $region33: #{tpu_custom_call.1} parent=1 // pred_fallthru
      _
    // Predicated region
    $region34: #{tpu_custom_call.1} parent=1 // pred_check
      _
    $region35: #{tpu_custom_call.1} parent=1 // pred_check_branch
      %367 = sbr.rel (0) target = $region37
    $region36: #{tpu_custom_call.1} parent=1 // pred_region
      _
    $region37: #{tpu_custom_call.1} parent=1 // pred_fallthru
      _
    // Predicated region
    $region38: #{tpu_custom_call.1} parent=1 // pred_check
      _
    $region39: #{tpu_custom_call.1} parent=1 // pred_check_branch
      %369 = sbr.rel (0) target = $region41
    $region40: #{tpu_custom_call.1} parent=1 // pred_region
      %370 = dma.done [#allocation4], 32
    $region41: #{tpu_custom_call.1} parent=1 // pred_fallthru
      _
    // Predicated region
    $region42: #{tpu_custom_call.1} parent=1 // pred_check
      _
    $region43: #{tpu_custom_call.1} parent=1 // pred_check_branch
      %372 = sbr.rel (0) target = $region45
    $region44: #{tpu_custom_call.1} parent=1 // pred_region
      %373 = dma.done [#allocation9], 32
    $region45: #{tpu_custom_call.1} parent=1 // pred_fallthru
      _
    // Predicated region
    $region46: #{tpu_custom_call.1} parent=1 // pred_check
      _
    $region47: #{tpu_custom_call.1} parent=1 // pred_check_branch
      %375 = sbr.rel (0) target = $region49
    $region48: #{tpu_custom_call.1} parent=1 // pred_region
      _
    $region49: #{tpu_custom_call.1} parent=1 // pred_fallthru
      _
    %376 = vsyncpa [#allocation3], 1
    %377 = vsyncpa [#allocation6], 1
    %378 = vsyncpa [#allocation4], 1
    %379 = vsyncpa [#allocation9], 1

</llo_original>
